<compile_context>
chip_gen: v5e
topology: v5e:2x2
jax: 0.10.0
libtpu: 0.0.40
codegen_flags: <defaults>
</compile_context>

<pallas_src>
import functools

import jax
import jax.numpy as jnp
from jax.experimental import pallas as pl
from jax.experimental.pallas import tpu as pltpu


# ----------------------------------------------------------------------------
# Kernels
# ----------------------------------------------------------------------------
def _argmax_onehot_kernel(x_ref, o_ref):
    """Single-pass: whole row (length N) resident in the block."""
    x = x_ref[...]                                        # (TB, N) float32
    n = x.shape[-1]
    row_max = jnp.max(x, axis=-1, keepdims=True)          # (TB, 1)
    idx = jax.lax.broadcasted_iota(jnp.int32, (1, n), 1)  # (1, N)
    is_max = x == row_max                                 # (TB, N)
    # torch.argmax "first occurrence" tie-break.
    first_idx = jnp.min(jnp.where(is_max, idx, n), axis=-1, keepdims=True)
    o_ref[...] = jnp.where(idx == first_idx, 1.0, 0.0).astype(o_ref.dtype)


def _argmax_idx_kernel(x_ref, idx_ref, m_sc, i_sc, *, n_total):
    """Two-pass path, pass 1: running-max argmax over column tiles."""
    j = pl.program_id(1)

    @pl.when(j == 0)
    def _():
        m_sc[...] = jnp.full_like(m_sc, -jnp.inf)
        i_sc[...] = jnp.zeros_like(i_sc)

    x = x_ref[...]                                        # (TB, TN)
    tn = x.shape[-1]
    cols = jax.lax.broadcasted_iota(jnp.int32, (1, tn), 1) + j * tn
    # Mask the (possibly out-of-range) lane tail of the last column tile.
    xm = jnp.where(cols < n_total, x, -jnp.inf)
    local_max = jnp.max(xm, axis=-1, keepdims=True)       # (TB, 1)
    is_max = xm == local_max
    local_first = jnp.min(jnp.where(is_max, cols, n_total),
                          axis=-1, keepdims=True)         # (TB, 1) int32
    # Strictly-greater keeps the earlier tile on ties -> first occurrence.
    better = local_max > m_sc[...]
    i_sc[...] = jnp.where(better, local_first, i_sc[...])
    m_sc[...] = jnp.where(better, local_max, m_sc[...])

    @pl.when(j == pl.num_programs(1) - 1)
    def _():
        idx_ref[...] = i_sc[...]


def _onehot_from_idx_kernel(idx_ref, o_ref):
    """Two-pass path, pass 2: scatter the one-hot from argmax indices."""
    j = pl.program_id(1)
    tn = o_ref.shape[-1]
    cols = jax.lax.broadcasted_iota(jnp.int32, (1, tn), 1) + j * tn
    o_ref[...] = jnp.where(cols == idx_ref[...], 1.0, 0.0).astype(o_ref.dtype)


# ----------------------------------------------------------------------------
# Generation-aware sizing helpers
# ----------------------------------------------------------------------------
def _tpu_vmem_and_cores():
    """Best-effort (vmem_capacity_bytes_per_core, tensorcores_per_chip)."""
    vmem = 64 << 20      # conservative default = v7x per-TC capacity
    cores = 1
    try:
        info = pltpu.get_tpu_info()
        v = getattr(info, "vmem_capacity_bytes", None)
        if v:
            vmem = int(v)
        for name in ("num_cores", "cores_per_chip", "tensorcore_count"):
            c = getattr(info, name, None)
            if c:
                cores = int(c)
                break
    except Exception:
        pass
    try:
        kind = jax.devices()[0].device_kind.lower()
        if "v7" in kind:
            cores = max(cores, 2)
            vmem = min(vmem, 64 << 20)   # 64 MiB per TC on v7x
    except Exception:
        pass
    return vmem, cores


def _choose_tile_b(B, n_lanes, *, vmem_budget, num_cores):
    """Row-tile size for (tile_b, N) blocks.

    Live peak ~= 2x input + 2x output (double-buffered) + ~1 materialized
    temporary, all f32 and n_lanes wide -> 5 tile-sized buffers.
    """
    per_row_bytes = n_lanes * 4 * 5
    tile = max(8, vmem_budget // per_row_bytes)
    tile = max(8, (tile // 8) * 8)                       # sublane aligned
    if num_cores >= 2 and B > 8:
        # Megacore (v7x): keep >=2 grid steps per TensorCore so each core
        # still overlaps DMA with compute.  (Could also use CORE_PARALLEL.)
        cap = -(-B // (2 * num_cores))
        cap = ((cap + 7) // 8) * 8
        tile = min(tile, max(8, cap))
    tile = min(tile, ((B + 7) // 8) * 8)                 # never exceed rounded B
    return int(tile)


# ----------------------------------------------------------------------------
# Solver wrapper
# ----------------------------------------------------------------------------
def _single_pass(x, *, tile_b, vmem_capacity, out_dtype):
    B, N = x.shape
    n_lanes = (N + 127) // 128 * 128
    block_bytes = tile_b * n_lanes * 4
    vmem_limit = int(min(max(5 * block_bytes + (2 << 20), 16 << 20),
                         vmem_capacity - (4 << 20)))
    out_itemsize = jnp.dtype(out_dtype).itemsize
    return pl.pallas_call(
        _argmax_onehot_kernel,
        out_shape=jax.ShapeDtypeStruct((B, N), out_dtype),
        grid_spec=pltpu.PrefetchScalarGridSpec(
            num_scalar_prefetch=0,
            grid=(pl.cdiv(B, tile_b),),
            in_specs=[pl.BlockSpec((tile_b, N), lambda i: (i, 0))],
            out_specs=pl.BlockSpec((tile_b, N), lambda i: (i, 0)),
        ),
        compiler_params=pltpu.CompilerParams(
            dimension_semantics=("parallel",),
            vmem_limit_bytes=vmem_limit,
        ),
        cost_estimate=pl.CostEstimate(
            flops=5 * B * N,
            transcendentals=0,
            bytes_accessed=B * N * (4 + out_itemsize),
        ),
    )(x)


def _two_pass(x, *, vmem_budget, vmem_capacity, out_dtype, tile_n=None):
    """Wide-N fallback: chunk the lane axis; argmax reduce, then scatter."""
    B, N = x.shape
    tile_b = max(8, min(256, ((B + 7) // 8) * 8))
    if tile_n is None:
        per_col_bytes = tile_b * 4 * 4       # ~4 live blocks of f32
        tile_n = max(128, (vmem_budget // per_col_bytes) // 128 * 128)
    tile_n = int(min(tile_n, (N + 127) // 128 * 128))
    grid = (pl.cdiv(B, tile_b), pl.cdiv(N, tile_n))
    block_bytes = tile_b * tile_n * 4
    vmem_limit = int(min(max(4 * block_bytes + (2 << 20), 16 << 20),
                         vmem_capacity - (4 << 20)))
    out_itemsize = jnp.dtype(out_dtype).itemsize

    # Pass 1: per-row argmax index over N chunks -> (B, 1) int32.
    idx = pl.pallas_call(
        functools.partial(_argmax_idx_kernel, n_total=N),
        out_shape=jax.ShapeDtypeStruct((B, 1), jnp.int32),
        grid_spec=pltpu.PrefetchScalarGridSpec(
            num_scalar_prefetch=0,
            grid=grid,
            in_specs=[pl.BlockSpec((tile_b, tile_n), lambda i, j: (i, j))],
            out_specs=pl.BlockSpec((tile_b, 1), lambda i, j: (i, 0)),
            scratch_shapes=[pltpu.VMEM((tile_b, 1), jnp.float32),
                            pltpu.VMEM((tile_b, 1), jnp.int32)],
        ),
        compiler_params=pltpu.CompilerParams(
            dimension_semantics=("parallel", "arbitrary"),
            vmem_limit_bytes=vmem_limit,
        ),
        cost_estimate=pl.CostEstimate(
            flops=6 * B * N, transcendentals=0,
            bytes_accessed=B * N * 4 + B * 4,
        ),
    )(x)

    # Pass 2: lane-tiled one-hot scatter from the indices.
    return pl.pallas_call(
        _onehot_from_idx_kernel,
        out_shape=jax.ShapeDtypeStruct((B, N), out_dtype),
        grid_spec=pltpu.PrefetchScalarGridSpec(
            num_scalar_prefetch=0,
            grid=grid,
            in_specs=[pl.BlockSpec((tile_b, 1), lambda i, j: (i, 0))],
            out_specs=pl.BlockSpec((tile_b, tile_n), lambda i, j: (i, j)),
        ),
        compiler_params=pltpu.CompilerParams(
            dimension_semantics=("parallel", "parallel"),
            vmem_limit_bytes=vmem_limit,
        ),
        cost_estimate=pl.CostEstimate(
            flops=2 * B * N, transcendentals=0,
            bytes_accessed=B * 4 + B * N * out_itemsize,
        ),
    )(idx)


def simplex_lp_solver(x, *, tile_b=None, out_dtype=jnp.float32,
                      force_two_pass=False, tile_n=None):
    """Pallas solver: one-hot indicator of argmax along the last axis."""
    B, N = x.shape
    vmem_capacity, num_cores = _tpu_vmem_and_cores()
    vmem_budget = vmem_capacity // 2
    n_lanes = (N + 127) // 128 * 128

    # Wide-N robustness: if the minimal 8-row block can't fit the budget,
    # fall back to the N-chunked two-pass path instead of failing to compile.
    if force_two_pass or (8 * n_lanes * 4 * 5 > vmem_budget):
        return _two_pass(x, vmem_budget=vmem_budget, vmem_capacity=vmem_capacity,
                         out_dtype=out_dtype, tile_n=tile_n)

    if tile_b is None:
        tile_b = _choose_tile_b(B, n_lanes, vmem_budget=vmem_budget,
                                num_cores=num_cores)
    return _single_pass(x, tile_b=tile_b, vmem_capacity=vmem_capacity,
                        out_dtype=out_dtype)


class COptLayer:
    """JAX/Pallas port of the PyTorch COptLayer (forward pass only)."""

    def __init__(self, solver, num_samples=1, smoothing=1.0):
        self.solver = solver
        self.num_samples = num_samples   # backward-only hyperparameter
        self.smoothing = smoothing       # backward-only hyperparameter

    def __call__(self, x):
        # Forward semantics of COptFunction: return solver(x) unchanged.
        return self.solver(x)


if __name__ == "__main__":
    key = jax.random.PRNGKey(0)
    layer = COptLayer(simplex_lp_solver, num_samples=1, smoothing=1.0)

    # Case 1: lane-dense N (exercises the big-tile single-pass path).
    B, N = 256, 128
    x = jax.random.normal(key, (B, N), dtype=jnp.float32)
    out = jax.block_until_ready(layer(x))
    ref = jax.nn.one_hot(jnp.argmax(x, axis=-1), N, dtype=jnp.float32)
    assert out.shape == (B, N) and out.dtype == jnp.float32
    assert bool(jnp.allclose(out, ref)), "mismatch vs reference solver (N=128)"

    # Case 2: N not a multiple of 128 (now handled in-kernel, no pad/slice ops).
    B2, N2 = 16, 100
    x2 = jax.random.normal(jax.random.PRNGKey(1), (B2, N2), dtype=jnp.float32)
    out2 = jax.block_until_ready(layer(x2))
    ref2 = jax.nn.one_hot(jnp.argmax(x2, axis=-1), N2, dtype=jnp.float32)
    assert out2.shape == (B2, N2)
    assert bool(jnp.allclose(out2, ref2)), "mismatch vs reference solver (N=100)"

    # Case 3: force the wide-N two-pass fallback with multiple column tiles.
    B3, N3 = 32, 300
    x3 = jax.random.normal(jax.random.PRNGKey(2), (B3, N3), dtype=jnp.float32)
    out3 = jax.block_until_ready(
        simplex_lp_solver(x3, force_two_pass=True, tile_n=128))
    ref3 = jax.nn.one_hot(jnp.argmax(x3, axis=-1), N3, dtype=jnp.float32)
    assert out3.shape == (B3, N3)
    assert bool(jnp.allclose(out3, ref3)), "mismatch vs reference solver (two-pass)"

    print("KERNEL_OK")
</pallas_src>

<mosaic_0001>
module attributes {stable_mosaic.version = 11 : i64} {
  func.func @_argmax_onehot_kernel(%arg0: i32, %arg1: memref<256x128xf32, #tpu.memory_space<vmem>>, %arg2: memref<256x128xf32, #tpu.memory_space<vmem>>) attributes {dimension_semantics = [#tpu.dimension_semantics<parallel>], iteration_bounds = array<i64: 1>, scalar_prefetch = 0 : i64, scratch_operands = 0 : i64, tpu.core_type = #tpu.core_type<tc>, window_params = [{transform_indices = @transform_0, window_bounds = array<i64: 256, 128>}, {transform_indices = @transform_1, window_bounds = array<i64: 256, 128>}]} {
    %c0 = arith.constant 0 : index
    %c0_0 = arith.constant 0 : index
    %0 = vector.load %arg1[%c0, %c0_0] : memref<256x128xf32, #tpu.memory_space<vmem>>, vector<256x128xf32>
    %cst = arith.constant dense<0xFF800000> : vector<256xf32>
    %1 = vector.multi_reduction <maximumf>, %0, %cst [1] : vector<256x128xf32> to vector<256xf32>
    %2 = vector.shape_cast %1 : vector<256xf32> to vector<256x1xf32>
    %3 = tpu.iota {dimensions = array<i32: 1>} : vector<1x128xi32>
    %4 = vector.broadcast %2 : vector<256x1xf32> to vector<256x128xf32>
    %5 = arith.cmpf oeq, %0, %4 : vector<256x128xf32>
    %c128_i32 = arith.constant 128 : i32
    %6 = vector.shape_cast %3 : vector<1x128xi32> to vector<1x128xi32>
    %7 = vector.broadcast %6 : vector<1x128xi32> to vector<256x128xi32>
    %8 = vector.broadcast %c128_i32 : i32 to vector<256x128xi32>
    %9 = arith.select %5, %7, %8 : vector<256x128xi1>, vector<256x128xi32>
    %cst_1 = arith.constant dense<2147483647> : vector<256xi32>
    %10 = vector.multi_reduction <minsi>, %9, %cst_1 [1] : vector<256x128xi32> to vector<256xi32>
    %11 = vector.shape_cast %10 : vector<256xi32> to vector<256x1xi32>
    %12 = vector.broadcast %3 : vector<1x128xi32> to vector<256x128xi32>
    %13 = vector.broadcast %11 : vector<256x1xi32> to vector<256x128xi32>
    %14 = arith.cmpi eq, %12, %13 : vector<256x128xi32>
    %cst_2 = arith.constant 1.000000e+00 : f32
    %cst_3 = arith.constant 0.000000e+00 : f32
    %15 = vector.broadcast %cst_2 : f32 to vector<256x128xf32>
    %16 = vector.broadcast %cst_3 : f32 to vector<256x128xf32>
    %17 = arith.select %14, %15, %16 : vector<256x128xi1>, vector<256x128xf32>
    %c0_4 = arith.constant 0 : index
    %c0_5 = arith.constant 0 : index
    %18 = vector.load %arg2[%c0_4, %c0_5] : memref<256x128xf32, #tpu.memory_space<vmem>>, vector<256x128xf32>
    tpu.vector_store %arg2[%c0_4, %c0_5], %17 {strides = array<i32>} : memref<256x128xf32, #tpu.memory_space<vmem>>, vector<256x128xf32>,
    return
  }
  func.func @transform_0(%arg0: i32) -> (i32, i32) {
    %c0_i32 = arith.constant 0 : i32
    %c0_i32_0 = arith.constant 0 : i32
    return %arg0, %c0_i32 : i32, i32
  }
  func.func @transform_1(%arg0: i32) -> (i32, i32) {
    %c0_i32 = arith.constant 0 : i32
    %c0_i32_0 = arith.constant 0 : i32
    return %arg0, %c0_i32 : i32, i32
  }
}

</mosaic_0001>

<llo_original>
// kernel: tpu_custom_call.1
$region0: #{tpu_custom_call.1}
  #allocation0 [shape = 'u32[]', space=smem, size = 0x4, offset = 0x4, fixed_abs, tag = 'smem constant byte address 0x4 - core index']
  #allocation1 [shape = 'u32[72,128]{1,0:T(1,128)}', space=vmem, size = 0x9000, scoped, tag = 'internal scratch']
  %s0 = inlined_call_operand.hbm [shape: f32[256,128], index: 0, kind: input, shape index: {}]
  %s1 = inlined_call_operand.hbm [shape: f32[256,128], index: 1, kind: output, shape index: {}]
  %s2 = sld [smem:[#allocation0]]
  $region18: #{tpu_custom_call.1} parent=0
    _
  %s4 = ssub.s32 1, %s2
  %s5 = scalar_select 0, %s4, %s2
  $region1: #{tpu_custom_call.1} parent=0
    #allocation2 [shape = 'u8[131072]{0}', space=vmem, size = 0x20000, scoped, tag = 'input window, operand 0, single buffered']
    #allocation3 [shape = 's32[1]{0}', space=sflag, size = 0x4, scoped, tag = 'scoped memory for tpu_custom_call.1']
    #allocation4 [shape = 's32[1]{0}', space=sflag, size = 0x4, scoped, tag = 'scoped memory for tpu_custom_call.1']
    #allocation5 [shape = 'u8[131072]{0}', space=vmem, size = 0x20000, scoped, tag = 'output window, operand 0, single buffered']
    %6 = vsyncpa [#allocation3], 0
    %7 = vsyncpa [#allocation4], 0
    // Predicated region
    $region2: #{tpu_custom_call.1} parent=1 // pred_check
      _
    $region3: #{tpu_custom_call.1} parent=1 // pred_check_branch
      %9 = sbr.rel (0) target = $region5
    $region4: #{tpu_custom_call.1} parent=1 // pred_region
      %11 = vsyncadd [#allocation3], 0
      %s12 = sshll.u32 %s0, 4
      %s13 = int_to_ptr.hbm [resolvable:$true] %s12
      %s14 = sshll.u32 [#allocation2], 4
      %s15 = int_to_ptr.vmem [resolvable:$true] %s14
      %20 = dma.hbm_to_vmem [thread:$0]  %s13, 4096, %s15, [#allocation3], 128, 128, 8
    $region5: #{tpu_custom_call.1} parent=1 // pred_fallthru
      _
    // Predicated region
    $region6: #{tpu_custom_call.1} parent=1 // pred_check
      _
    $region7: #{tpu_custom_call.1} parent=1 // pred_check_branch
      %22 = sbr.rel (0) target = $region9
    $region8: #{tpu_custom_call.1} parent=1 // pred_region
      %24 = dma.done [#allocation3], 4096
    $region9: #{tpu_custom_call.1} parent=1 // pred_fallthru
      _
    %v25 = vld [vmem:[#allocation2] sm:$0xff]
    %v26 = vld [vmem:[#allocation2 + $0x8] sm:$0xff]
    %v27 = vld [vmem:[#allocation2 + $0x10] sm:$0xff]
    %v28 = vld [vmem:[#allocation2 + $0x18] sm:$0xff]
    %v29 = vld [vmem:[#allocation2 + $0x20] sm:$0xff]
    %v30 = vld [vmem:[#allocation2 + $0x28] sm:$0xff]
    %v31 = vld [vmem:[#allocation2 + $0x30] sm:$0xff]
    %v32 = vld [vmem:[#allocation2 + $0x38] sm:$0xff]
    %v33 = vld [vmem:[#allocation2 + $0x40] sm:$0xff]
    %v34 = vld [vmem:[#allocation2 + $0x48] sm:$0xff]
    %v35 = vld [vmem:[#allocation2 + $0x50] sm:$0xff]
    %v36 = vld [vmem:[#allocation2 + $0x58] sm:$0xff]
    %v37 = vld [vmem:[#allocation2 + $0x60] sm:$0xff]
    %v38 = vld [vmem:[#allocation2 + $0x68] sm:$0xff]
    %v39 = vld [vmem:[#allocation2 + $0x70] sm:$0xff]
    %v40 = vld [vmem:[#allocation2 + $0x78] sm:$0xff]
    %v41 = vld [vmem:[#allocation2 + $0x80] sm:$0xff]
    %v42 = vld [vmem:[#allocation2 + $0x88] sm:$0xff]
    %v43 = vld [vmem:[#allocation2 + $0x90] sm:$0xff]
    %v44 = vld [vmem:[#allocation2 + $0x98] sm:$0xff]
    %v45 = vld [vmem:[#allocation2 + $0xa0] sm:$0xff]
    %v46 = vld [vmem:[#allocation2 + $0xa8] sm:$0xff]
    %v47 = vld [vmem:[#allocation2 + $0xb0] sm:$0xff]
    %v48 = vld [vmem:[#allocation2 + $0xb8] sm:$0xff]
    %v49 = vld [vmem:[#allocation2 + $0xc0] sm:$0xff]
    %v50 = vld [vmem:[#allocation2 + $0xc8] sm:$0xff]
    %v51 = vld [vmem:[#allocation2 + $0xd0] sm:$0xff]
    %v52 = vld [vmem:[#allocation2 + $0xd8] sm:$0xff]
    %v53 = vld [vmem:[#allocation2 + $0xe0] sm:$0xff]
    %v54 = vld [vmem:[#allocation2 + $0xe8] sm:$0xff]
    %v55 = vld [vmem:[#allocation2 + $0xf0] sm:$0xff]
    %v56 = vld [vmem:[#allocation2 + $0xf8] sm:$0xff]
    %57 = vmax.xlane.f32.xlu0 %v25
    %v58 = vpop.xlane.xlu0 %57
    %59 = vmax.xlane.f32.xlu0 %v26
    %v60 = vpop.xlane.xlu0 %59
    %61 = vmax.xlane.f32.xlu0 %v27
    %v62 = vpop.xlane.xlu0 %61
    %63 = vmax.xlane.f32.xlu0 %v28
    %v64 = vpop.xlane.xlu0 %63
    %65 = vmax.xlane.f32.xlu0 %v29
    %v66 = vpop.xlane.xlu0 %65
    %67 = vmax.xlane.f32.xlu0 %v30
    %v68 = vpop.xlane.xlu0 %67
    %69 = vmax.xlane.f32.xlu0 %v31
    %v70 = vpop.xlane.xlu0 %69
    %71 = vmax.xlane.f32.xlu0 %v32
    %v72 = vpop.xlane.xlu0 %71
    %73 = vmax.xlane.f32.xlu0 %v33
    %v74 = vpop.xlane.xlu0 %73
    %75 = vmax.xlane.f32.xlu0 %v34
    %v76 = vpop.xlane.xlu0 %75
    %77 = vmax.xlane.f32.xlu0 %v35
    %v78 = vpop.xlane.xlu0 %77
    %79 = vmax.xlane.f32.xlu0 %v36
    %v80 = vpop.xlane.xlu0 %79
    %81 = vmax.xlane.f32.xlu0 %v37
    %v82 = vpop.xlane.xlu0 %81
    %83 = vmax.xlane.f32.xlu0 %v38
    %v84 = vpop.xlane.xlu0 %83
    %85 = vmax.xlane.f32.xlu0 %v39
    %v86 = vpop.xlane.xlu0 %85
    %87 = vmax.xlane.f32.xlu0 %v40
    %v88 = vpop.xlane.xlu0 %87
    %89 = vmax.xlane.f32.xlu0 %v41
    %v90 = vpop.xlane.xlu0 %89
    %91 = vmax.xlane.f32.xlu0 %v42
    %v92 = vpop.xlane.xlu0 %91
    %93 = vmax.xlane.f32.xlu0 %v43
    %v94 = vpop.xlane.xlu0 %93
    %95 = vmax.xlane.f32.xlu0 %v44
    %v96 = vpop.xlane.xlu0 %95
    %97 = vmax.xlane.f32.xlu0 %v45
    %v98 = vpop.xlane.xlu0 %97
    %99 = vmax.xlane.f32.xlu0 %v46
    %v100 = vpop.xlane.xlu0 %99
    %101 = vmax.xlane.f32.xlu0 %v47
    %v102 = vpop.xlane.xlu0 %101
    %103 = vmax.xlane.f32.xlu0 %v48
    %v104 = vpop.xlane.xlu0 %103
    %105 = vmax.xlane.f32.xlu0 %v49
    %v106 = vpop.xlane.xlu0 %105
    %107 = vmax.xlane.f32.xlu0 %v50
    %v108 = vpop.xlane.xlu0 %107
    %109 = vmax.xlane.f32.xlu0 %v51
    %v110 = vpop.xlane.xlu0 %109
    %111 = vmax.xlane.f32.xlu0 %v52
    %v112 = vpop.xlane.xlu0 %111
    %113 = vmax.xlane.f32.xlu0 %v53
    %v114 = vpop.xlane.xlu0 %113
    %115 = vmax.xlane.f32.xlu0 %v54
    %v116 = vpop.xlane.xlu0 %115
    %117 = vmax.xlane.f32.xlu0 %v55
    %v118 = vpop.xlane.xlu0 %117
    %119 = vmax.xlane.f32.xlu0 %v56
    %v120 = vpop.xlane.xlu0 %119
    %v121 = vlaneseq
    %v122 = vand.u32 %v121, 127
    %vm123 = vcmp.eq.f32.partialorder %v25, %v58
    %vm124 = vcmp.eq.f32.partialorder %v26, %v60
    %vm125 = vcmp.eq.f32.partialorder %v27, %v62
    %vm126 = vcmp.eq.f32.partialorder %v28, %v64
    %vm127 = vcmp.eq.f32.partialorder %v29, %v66
    %vm128 = vcmp.eq.f32.partialorder %v30, %v68
    %vm129 = vcmp.eq.f32.partialorder %v31, %v70
    %vm130 = vcmp.eq.f32.partialorder %v32, %v72
    %vm131 = vcmp.eq.f32.partialorder %v33, %v74
    %vm132 = vcmp.eq.f32.partialorder %v34, %v76
    %vm133 = vcmp.eq.f32.partialorder %v35, %v78
    %vm134 = vcmp.eq.f32.partialorder %v36, %v80
    %vm135 = vcmp.eq.f32.partialorder %v37, %v82
    %vm136 = vcmp.eq.f32.partialorder %v38, %v84
    %vm137 = vcmp.eq.f32.partialorder %v39, %v86
    %vm138 = vcmp.eq.f32.partialorder %v40, %v88
    %vm139 = vcmp.eq.f32.partialorder %v41, %v90
    %vm140 = vcmp.eq.f32.partialorder %v42, %v92
    %vm141 = vcmp.eq.f32.partialorder %v43, %v94
    %vm142 = vcmp.eq.f32.partialorder %v44, %v96
    %vm143 = vcmp.eq.f32.partialorder %v45, %v98
    %vm144 = vcmp.eq.f32.partialorder %v46, %v100
    %vm145 = vcmp.eq.f32.partialorder %v47, %v102
    %vm146 = vcmp.eq.f32.partialorder %v48, %v104
    %vm147 = vcmp.eq.f32.partialorder %v49, %v106
    %vm148 = vcmp.eq.f32.partialorder %v50, %v108
    %vm149 = vcmp.eq.f32.partialorder %v51, %v110
    %vm150 = vcmp.eq.f32.partialorder %v52, %v112
    %vm151 = vcmp.eq.f32.partialorder %v53, %v114
    %vm152 = vcmp.eq.f32.partialorder %v54, %v116
    %vm153 = vcmp.eq.f32.partialorder %v55, %v118
    %vm154 = vcmp.eq.f32.partialorder %v56, %v120
    %v155 = vsel %vm123, %v122, 128
    %v156 = vsel %vm124, %v122, 128
    %v157 = vsel %vm125, %v122, 128
    %v158 = vsel %vm126, %v122, 128
    %v159 = vsel %vm127, %v122, 128
    %v160 = vsel %vm128, %v122, 128
    %v161 = vsel %vm129, %v122, 128
    %v162 = vsel %vm130, %v122, 128
    %v163 = vsel %vm131, %v122, 128
    %v164 = vsel %vm132, %v122, 128
    %v165 = vsel %vm133, %v122, 128
    %v166 = vsel %vm134, %v122, 128
    %v167 = vsel %vm135, %v122, 128
    %v168 = vsel %vm136, %v122, 128
    %v169 = vsel %vm137, %v122, 128
    %v170 = vsel %vm138, %v122, 128
    %v171 = vsel %vm139, %v122, 128
    %v172 = vsel %vm140, %v122, 128
    %v173 = vsel %vm141, %v122, 128
    %v174 = vsel %vm142, %v122, 128
    %v175 = vsel %vm143, %v122, 128
    %v176 = vsel %vm144, %v122, 128
    %v177 = vsel %vm145, %v122, 128
    %v178 = vsel %vm146, %v122, 128
    %v179 = vsel %vm147, %v122, 128
    %v180 = vsel %vm148, %v122, 128
    %v181 = vsel %vm149, %v122, 128
    %v182 = vsel %vm150, %v122, 128
    %v183 = vsel %vm151, %v122, 128
    %v184 = vsel %vm152, %v122, 128
    %v185 = vsel %vm153, %v122, 128
    %v186 = vsel %vm154, %v122, 128
    %v187 = vand.u32 %v155, 65535
    %v188 = vshra.s32 %v155, 16
    %v189 = vcvt.s32.f32 %v187
    %v190 = vcvt.s32.f32 %v188
    %191 = vmin.xlane.f32.xlu0 %v190
    %v192 = vpop.xlane.xlu0 %191
    %vm193 = vcmp.eq.f32.partialorder %v190, %v192
    %v194 = vsel %vm193, %v189, inf
    %195 = vmin.xlane.f32.xlu0 %v194
    %v196 = vpop.xlane.xlu0 %195
    %v197 = vcvt.f32.s32 %v196
    %v198 = vcvt.f32.s32 %v192
    %v199 = vshll.u32 %v198, 16
    %v200 = vadd.s32 %v199, %v197
    %v201 = vand.u32 %v156, 65535
    %v202 = vshra.s32 %v156, 16
    %v203 = vcvt.s32.f32 %v201
    %v204 = vcvt.s32.f32 %v202
    %205 = vmin.xlane.f32.xlu0 %v204
    %v206 = vpop.xlane.xlu0 %205
    %vm207 = vcmp.eq.f32.partialorder %v204, %v206
    %v208 = vsel %vm207, %v203, inf
    %209 = vmin.xlane.f32.xlu0 %v208
    %v210 = vpop.xlane.xlu0 %209
    %v211 = vcvt.f32.s32 %v210
    %v212 = vcvt.f32.s32 %v206
    %v213 = vshll.u32 %v212, 16
    %v214 = vadd.s32 %v213, %v211
    %v215 = vand.u32 %v157, 65535
    %v216 = vshra.s32 %v157, 16
    %v217 = vcvt.s32.f32 %v215
    %v218 = vcvt.s32.f32 %v216
    %219 = vmin.xlane.f32.xlu0 %v218
    %v220 = vpop.xlane.xlu0 %219
    %vm221 = vcmp.eq.f32.partialorder %v218, %v220
    %v222 = vsel %vm221, %v217, inf
    %223 = vmin.xlane.f32.xlu0 %v222
    %v224 = vpop.xlane.xlu0 %223
    %v225 = vcvt.f32.s32 %v224
    %v226 = vcvt.f32.s32 %v220
    %v227 = vshll.u32 %v226, 16
    %v228 = vadd.s32 %v227, %v225
    %v229 = vand.u32 %v158, 65535
    %v230 = vshra.s32 %v158, 16
    %v231 = vcvt.s32.f32 %v229
    %v232 = vcvt.s32.f32 %v230
    %233 = vmin.xlane.f32.xlu0 %v232
    %v234 = vpop.xlane.xlu0 %233
    %vm235 = vcmp.eq.f32.partialorder %v232, %v234
    %v236 = vsel %vm235, %v231, inf
    %237 = vmin.xlane.f32.xlu0 %v236
    %v238 = vpop.xlane.xlu0 %237
    %v239 = vcvt.f32.s32 %v238
    %v240 = vcvt.f32.s32 %v234
    %v241 = vshll.u32 %v240, 16
    %v242 = vadd.s32 %v241, %v239
    %v243 = vand.u32 %v159, 65535
    %v244 = vshra.s32 %v159, 16
    %v245 = vcvt.s32.f32 %v243
    %v246 = vcvt.s32.f32 %v244
    %247 = vmin.xlane.f32.xlu0 %v246
    %v248 = vpop.xlane.xlu0 %247
    %vm249 = vcmp.eq.f32.partialorder %v246, %v248
    %v250 = vsel %vm249, %v245, inf
    %251 = vmin.xlane.f32.xlu0 %v250
    %v252 = vpop.xlane.xlu0 %251
    %v253 = vcvt.f32.s32 %v252
    %v254 = vcvt.f32.s32 %v248
    %v255 = vshll.u32 %v254, 16
    %v256 = vadd.s32 %v255, %v253
    %v257 = vand.u32 %v160, 65535
    %v258 = vshra.s32 %v160, 16
    %v259 = vcvt.s32.f32 %v257
    %v260 = vcvt.s32.f32 %v258
    %261 = vmin.xlane.f32.xlu0 %v260
    %v262 = vpop.xlane.xlu0 %261
    %vm263 = vcmp.eq.f32.partialorder %v260, %v262
    %v264 = vsel %vm263, %v259, inf
    %265 = vmin.xlane.f32.xlu0 %v264
    %v266 = vpop.xlane.xlu0 %265
    %v267 = vcvt.f32.s32 %v266
    %v268 = vcvt.f32.s32 %v262
    %v269 = vshll.u32 %v268, 16
    %v270 = vadd.s32 %v269, %v267
    %v271 = vand.u32 %v161, 65535
    %v272 = vshra.s32 %v161, 16
    %v273 = vcvt.s32.f32 %v271
    %v274 = vcvt.s32.f32 %v272
    %275 = vmin.xlane.f32.xlu0 %v274
    %v276 = vpop.xlane.xlu0 %275
    %vm277 = vcmp.eq.f32.partialorder %v274, %v276
    %v278 = vsel %vm277, %v273, inf
    %279 = vmin.xlane.f32.xlu0 %v278
    %v280 = vpop.xlane.xlu0 %279
    %v281 = vcvt.f32.s32 %v280
    %v282 = vcvt.f32.s32 %v276
    %v283 = vshll.u32 %v282, 16
    %v284 = vadd.s32 %v283, %v281
    %v285 = vand.u32 %v162, 65535
    %v286 = vshra.s32 %v162, 16
    %v287 = vcvt.s32.f32 %v285
    %v288 = vcvt.s32.f32 %v286
    %289 = vmin.xlane.f32.xlu0 %v288
    %v290 = vpop.xlane.xlu0 %289
    %vm291 = vcmp.eq.f32.partialorder %v288, %v290
    %v292 = vsel %vm291, %v287, inf
    %293 = vmin.xlane.f32.xlu0 %v292
    %v294 = vpop.xlane.xlu0 %293
    %v295 = vcvt.f32.s32 %v294
    %v296 = vcvt.f32.s32 %v290
    %v297 = vshll.u32 %v296, 16
    %v298 = vadd.s32 %v297, %v295
    %v299 = vand.u32 %v163, 65535
    %v300 = vshra.s32 %v163, 16
    %v301 = vcvt.s32.f32 %v299
    %v302 = vcvt.s32.f32 %v300
    %303 = vmin.xlane.f32.xlu0 %v302
    %v304 = vpop.xlane.xlu0 %303
    %vm305 = vcmp.eq.f32.partialorder %v302, %v304
    %v306 = vsel %vm305, %v301, inf
    %307 = vmin.xlane.f32.xlu0 %v306
    %v308 = vpop.xlane.xlu0 %307
    %v309 = vcvt.f32.s32 %v308
    %v310 = vcvt.f32.s32 %v304
    %v311 = vshll.u32 %v310, 16
    %v312 = vadd.s32 %v311, %v309
    %v313 = vand.u32 %v164, 65535
    %v314 = vshra.s32 %v164, 16
    %v315 = vcvt.s32.f32 %v313
    %v316 = vcvt.s32.f32 %v314
    %317 = vmin.xlane.f32.xlu0 %v316
    %v318 = vpop.xlane.xlu0 %317
    %vm319 = vcmp.eq.f32.partialorder %v316, %v318
    %v320 = vsel %vm319, %v315, inf
    %321 = vmin.xlane.f32.xlu0 %v320
    %v322 = vpop.xlane.xlu0 %321
    %v323 = vcvt.f32.s32 %v322
    %v324 = vcvt.f32.s32 %v318
    %v325 = vshll.u32 %v324, 16
    %v326 = vadd.s32 %v325, %v323
    %v327 = vand.u32 %v165, 65535
    %v328 = vshra.s32 %v165, 16
    %v329 = vcvt.s32.f32 %v327
    %v330 = vcvt.s32.f32 %v328
    %331 = vmin.xlane.f32.xlu0 %v330
    %v332 = vpop.xlane.xlu0 %331
    %vm333 = vcmp.eq.f32.partialorder %v330, %v332
    %v334 = vsel %vm333, %v329, inf
    %335 = vmin.xlane.f32.xlu0 %v334
    %v336 = vpop.xlane.xlu0 %335
    %v337 = vcvt.f32.s32 %v336
    %v338 = vcvt.f32.s32 %v332
    %v339 = vshll.u32 %v338, 16
    %v340 = vadd.s32 %v339, %v337
    %v341 = vand.u32 %v166, 65535
    %v342 = vshra.s32 %v166, 16
    %v343 = vcvt.s32.f32 %v341
    %v344 = vcvt.s32.f32 %v342
    %345 = vmin.xlane.f32.xlu0 %v344
    %v346 = vpop.xlane.xlu0 %345
    %vm347 = vcmp.eq.f32.partialorder %v344, %v346
    %v348 = vsel %vm347, %v343, inf
    %349 = vmin.xlane.f32.xlu0 %v348
    %v350 = vpop.xlane.xlu0 %349
    %v351 = vcvt.f32.s32 %v350
    %v352 = vcvt.f32.s32 %v346
    %v353 = vshll.u32 %v352, 16
    %v354 = vadd.s32 %v353, %v351
    %v355 = vand.u32 %v167, 65535
    %v356 = vshra.s32 %v167, 16
    %v357 = vcvt.s32.f32 %v355
    %v358 = vcvt.s32.f32 %v356
    %359 = vmin.xlane.f32.xlu0 %v358
    %v360 = vpop.xlane.xlu0 %359
    %vm361 = vcmp.eq.f32.partialorder %v358, %v360
    %v362 = vsel %vm361, %v357, inf
    %363 = vmin.xlane.f32.xlu0 %v362
    %v364 = vpop.xlane.xlu0 %363
    %v365 = vcvt.f32.s32 %v364
    %v366 = vcvt.f32.s32 %v360
    %v367 = vshll.u32 %v366, 16
    %v368 = vadd.s32 %v367, %v365
    %v369 = vand.u32 %v168, 65535
    %v370 = vshra.s32 %v168, 16
    %v371 = vcvt.s32.f32 %v369
    %v372 = vcvt.s32.f32 %v370
    %373 = vmin.xlane.f32.xlu0 %v372
    %v374 = vpop.xlane.xlu0 %373
    %vm375 = vcmp.eq.f32.partialorder %v372, %v374
    %v376 = vsel %vm375, %v371, inf
    %377 = vmin.xlane.f32.xlu0 %v376
    %v378 = vpop.xlane.xlu0 %377
    %v379 = vcvt.f32.s32 %v378
    %v380 = vcvt.f32.s32 %v374
    %v381 = vshll.u32 %v380, 16
    %v382 = vadd.s32 %v381, %v379
    %v383 = vand.u32 %v169, 65535
    %v384 = vshra.s32 %v169, 16
    %v385 = vcvt.s32.f32 %v383
    %v386 = vcvt.s32.f32 %v384
    %387 = vmin.xlane.f32.xlu0 %v386
    %v388 = vpop.xlane.xlu0 %387
    %vm389 = vcmp.eq.f32.partialorder %v386, %v388
    %v390 = vsel %vm389, %v385, inf
    %391 = vmin.xlane.f32.xlu0 %v390
    %v392 = vpop.xlane.xlu0 %391
    %v393 = vcvt.f32.s32 %v392
    %v394 = vcvt.f32.s32 %v388
    %v395 = vshll.u32 %v394, 16
    %v396 = vadd.s32 %v395, %v393
    %v397 = vand.u32 %v170, 65535
    %v398 = vshra.s32 %v170, 16
    %v399 = vcvt.s32.f32 %v397
    %v400 = vcvt.s32.f32 %v398
    %401 = vmin.xlane.f32.xlu0 %v400
    %v402 = vpop.xlane.xlu0 %401
    %vm403 = vcmp.eq.f32.partialorder %v400, %v402
    %v404 = vsel %vm403, %v399, inf
    %405 = vmin.xlane.f32.xlu0 %v404
    %v406 = vpop.xlane.xlu0 %405
    %v407 = vcvt.f32.s32 %v406
    %v408 = vcvt.f32.s32 %v402
    %v409 = vshll.u32 %v408, 16
    %v410 = vadd.s32 %v409, %v407
    %v411 = vand.u32 %v171, 65535
    %v412 = vshra.s32 %v171, 16
    %v413 = vcvt.s32.f32 %v411
    %v414 = vcvt.s32.f32 %v412
    %415 = vmin.xlane.f32.xlu0 %v414
    %v416 = vpop.xlane.xlu0 %415
    %vm417 = vcmp.eq.f32.partialorder %v414, %v416
    %v418 = vsel %vm417, %v413, inf
    %419 = vmin.xlane.f32.xlu0 %v418
    %v420 = vpop.xlane.xlu0 %419
    %v421 = vcvt.f32.s32 %v420
    %v422 = vcvt.f32.s32 %v416
    %v423 = vshll.u32 %v422, 16
    %v424 = vadd.s32 %v423, %v421
    %v425 = vand.u32 %v172, 65535
    %v426 = vshra.s32 %v172, 16
    %v427 = vcvt.s32.f32 %v425
    %v428 = vcvt.s32.f32 %v426
    %429 = vmin.xlane.f32.xlu0 %v428
    %v430 = vpop.xlane.xlu0 %429
    %vm431 = vcmp.eq.f32.partialorder %v428, %v430
    %v432 = vsel %vm431, %v427, inf
    %433 = vmin.xlane.f32.xlu0 %v432
    %v434 = vpop.xlane.xlu0 %433
    %v435 = vcvt.f32.s32 %v434
    %v436 = vcvt.f32.s32 %v430
    %v437 = vshll.u32 %v436, 16
    %v438 = vadd.s32 %v437, %v435
    %v439 = vand.u32 %v173, 65535
    %v440 = vshra.s32 %v173, 16
    %v441 = vcvt.s32.f32 %v439
    %v442 = vcvt.s32.f32 %v440
    %443 = vmin.xlane.f32.xlu0 %v442
    %v444 = vpop.xlane.xlu0 %443
    %vm445 = vcmp.eq.f32.partialorder %v442, %v444
    %v446 = vsel %vm445, %v441, inf
    %447 = vmin.xlane.f32.xlu0 %v446
    %v448 = vpop.xlane.xlu0 %447
    %v449 = vcvt.f32.s32 %v448
    %v450 = vcvt.f32.s32 %v444
    %v451 = vshll.u32 %v450, 16
    %v452 = vadd.s32 %v451, %v449
    %v453 = vand.u32 %v174, 65535
    %v454 = vshra.s32 %v174, 16
    %v455 = vcvt.s32.f32 %v453
    %v456 = vcvt.s32.f32 %v454
    %457 = vmin.xlane.f32.xlu0 %v456
    %v458 = vpop.xlane.xlu0 %457
    %vm459 = vcmp.eq.f32.partialorder %v456, %v458
    %v460 = vsel %vm459, %v455, inf
    %461 = vmin.xlane.f32.xlu0 %v460
    %v462 = vpop.xlane.xlu0 %461
    %v463 = vcvt.f32.s32 %v462
    %v464 = vcvt.f32.s32 %v458
    %v465 = vshll.u32 %v464, 16
    %v466 = vadd.s32 %v465, %v463
    %v467 = vand.u32 %v175, 65535
    %v468 = vshra.s32 %v175, 16
    %v469 = vcvt.s32.f32 %v467
    %v470 = vcvt.s32.f32 %v468
    %471 = vmin.xlane.f32.xlu0 %v470
    %v472 = vpop.xlane.xlu0 %471
    %vm473 = vcmp.eq.f32.partialorder %v470, %v472
    %v474 = vsel %vm473, %v469, inf
    %475 = vmin.xlane.f32.xlu0 %v474
    %v476 = vpop.xlane.xlu0 %475
    %v477 = vcvt.f32.s32 %v476
    %v478 = vcvt.f32.s32 %v472
    %v479 = vshll.u32 %v478, 16
    %v480 = vadd.s32 %v479, %v477
    %v481 = vand.u32 %v176, 65535
    %v482 = vshra.s32 %v176, 16
    %v483 = vcvt.s32.f32 %v481
    %v484 = vcvt.s32.f32 %v482
    %485 = vmin.xlane.f32.xlu0 %v484
    %v486 = vpop.xlane.xlu0 %485
    %vm487 = vcmp.eq.f32.partialorder %v484, %v486
    %v488 = vsel %vm487, %v483, inf
    %489 = vmin.xlane.f32.xlu0 %v488
    %v490 = vpop.xlane.xlu0 %489
    %v491 = vcvt.f32.s32 %v490
    %v492 = vcvt.f32.s32 %v486
    %v493 = vshll.u32 %v492, 16
    %v494 = vadd.s32 %v493, %v491
    %v495 = vand.u32 %v177, 65535
    %v496 = vshra.s32 %v177, 16
    %v497 = vcvt.s32.f32 %v495
    %v498 = vcvt.s32.f32 %v496
    %499 = vmin.xlane.f32.xlu0 %v498
    %v500 = vpop.xlane.xlu0 %499
    %vm501 = vcmp.eq.f32.partialorder %v498, %v500
    %v502 = vsel %vm501, %v497, inf
    %503 = vmin.xlane.f32.xlu0 %v502
    %v504 = vpop.xlane.xlu0 %503
    %v505 = vcvt.f32.s32 %v504
    %v506 = vcvt.f32.s32 %v500
    %v507 = vshll.u32 %v506, 16
    %v508 = vadd.s32 %v507, %v505
    %v509 = vand.u32 %v178, 65535
    %v510 = vshra.s32 %v178, 16
    %v511 = vcvt.s32.f32 %v509
    %v512 = vcvt.s32.f32 %v510
    %513 = vmin.xlane.f32.xlu0 %v512
    %v514 = vpop.xlane.xlu0 %513
    %vm515 = vcmp.eq.f32.partialorder %v512, %v514
    %v516 = vsel %vm515, %v511, inf
    %517 = vmin.xlane.f32.xlu0 %v516
    %v518 = vpop.xlane.xlu0 %517
    %v519 = vcvt.f32.s32 %v518
    %v520 = vcvt.f32.s32 %v514
    %v521 = vshll.u32 %v520, 16
    %v522 = vadd.s32 %v521, %v519
    %v523 = vand.u32 %v179, 65535
    %v524 = vshra.s32 %v179, 16
    %v525 = vcvt.s32.f32 %v523
    %v526 = vcvt.s32.f32 %v524
    %527 = vmin.xlane.f32.xlu0 %v526
    %v528 = vpop.xlane.xlu0 %527
    %vm529 = vcmp.eq.f32.partialorder %v526, %v528
    %v530 = vsel %vm529, %v525, inf
    %531 = vmin.xlane.f32.xlu0 %v530
    %v532 = vpop.xlane.xlu0 %531
    %v533 = vcvt.f32.s32 %v532
    %v534 = vcvt.f32.s32 %v528
    %v535 = vshll.u32 %v534, 16
    %v536 = vadd.s32 %v535, %v533
    %v537 = vand.u32 %v180, 65535
    %v538 = vshra.s32 %v180, 16
    %v539 = vcvt.s32.f32 %v537
    %v540 = vcvt.s32.f32 %v538
    %541 = vmin.xlane.f32.xlu0 %v540
    %v542 = vpop.xlane.xlu0 %541
    %vm543 = vcmp.eq.f32.partialorder %v540, %v542
    %v544 = vsel %vm543, %v539, inf
    %545 = vmin.xlane.f32.xlu0 %v544
    %v546 = vpop.xlane.xlu0 %545
    %v547 = vcvt.f32.s32 %v546
    %v548 = vcvt.f32.s32 %v542
    %v549 = vshll.u32 %v548, 16
    %v550 = vadd.s32 %v549, %v547
    %v551 = vand.u32 %v181, 65535
    %v552 = vshra.s32 %v181, 16
    %v553 = vcvt.s32.f32 %v551
    %v554 = vcvt.s32.f32 %v552
    %555 = vmin.xlane.f32.xlu0 %v554
    %v556 = vpop.xlane.xlu0 %555
    %vm557 = vcmp.eq.f32.partialorder %v554, %v556
    %v558 = vsel %vm557, %v553, inf
    %559 = vmin.xlane.f32.xlu0 %v558
    %v560 = vpop.xlane.xlu0 %559
    %v561 = vcvt.f32.s32 %v560
    %v562 = vcvt.f32.s32 %v556
    %v563 = vshll.u32 %v562, 16
    %v564 = vadd.s32 %v563, %v561
    %v565 = vand.u32 %v182, 65535
    %v566 = vshra.s32 %v182, 16
    %v567 = vcvt.s32.f32 %v565
    %v568 = vcvt.s32.f32 %v566
    %569 = vmin.xlane.f32.xlu0 %v568
    %v570 = vpop.xlane.xlu0 %569
    %vm571 = vcmp.eq.f32.partialorder %v568, %v570
    %v572 = vsel %vm571, %v567, inf
    %573 = vmin.xlane.f32.xlu0 %v572
    %v574 = vpop.xlane.xlu0 %573
    %v575 = vcvt.f32.s32 %v574
    %v576 = vcvt.f32.s32 %v570
    %v577 = vshll.u32 %v576, 16
    %v578 = vadd.s32 %v577, %v575
    %v579 = vand.u32 %v183, 65535
    %v580 = vshra.s32 %v183, 16
    %v581 = vcvt.s32.f32 %v579
    %v582 = vcvt.s32.f32 %v580
    %583 = vmin.xlane.f32.xlu0 %v582
    %v584 = vpop.xlane.xlu0 %583
    %vm585 = vcmp.eq.f32.partialorder %v582, %v584
    %v586 = vsel %vm585, %v581, inf
    %587 = vmin.xlane.f32.xlu0 %v586
    %v588 = vpop.xlane.xlu0 %587
    %v589 = vcvt.f32.s32 %v588
    %v590 = vcvt.f32.s32 %v584
    %v591 = vshll.u32 %v590, 16
    %v592 = vadd.s32 %v591, %v589
    %v593 = vand.u32 %v184, 65535
    %v594 = vshra.s32 %v184, 16
    %v595 = vcvt.s32.f32 %v593
    %v596 = vcvt.s32.f32 %v594
    %597 = vmin.xlane.f32.xlu0 %v596
    %v598 = vpop.xlane.xlu0 %597
    %vm599 = vcmp.eq.f32.partialorder %v596, %v598
    %v600 = vsel %vm599, %v595, inf
    %601 = vmin.xlane.f32.xlu0 %v600
    %v602 = vpop.xlane.xlu0 %601
    %v603 = vcvt.f32.s32 %v602
    %v604 = vcvt.f32.s32 %v598
    %v605 = vshll.u32 %v604, 16
    %v606 = vadd.s32 %v605, %v603
    %v607 = vand.u32 %v185, 65535
    %v608 = vshra.s32 %v185, 16
    %v609 = vcvt.s32.f32 %v607
    %v610 = vcvt.s32.f32 %v608
    %611 = vmin.xlane.f32.xlu0 %v610
    %v612 = vpop.xlane.xlu0 %611
    %vm613 = vcmp.eq.f32.partialorder %v610, %v612
    %v614 = vsel %vm613, %v609, inf
    %615 = vmin.xlane.f32.xlu0 %v614
    %v616 = vpop.xlane.xlu0 %615
    %v617 = vcvt.f32.s32 %v616
    %v618 = vcvt.f32.s32 %v612
    %v619 = vshll.u32 %v618, 16
    %v620 = vadd.s32 %v619, %v617
    %v621 = vand.u32 %v186, 65535
    %v622 = vshra.s32 %v186, 16
    %v623 = vcvt.s32.f32 %v621
    %v624 = vcvt.s32.f32 %v622
    %625 = vmin.xlane.f32.xlu0 %v624
    %v626 = vpop.xlane.xlu0 %625
    %vm627 = vcmp.eq.f32.partialorder %v624, %v626
    %v628 = vsel %vm627, %v623, inf
    %629 = vmin.xlane.f32.xlu0 %v628
    %v630 = vpop.xlane.xlu0 %629
    %v631 = vcvt.f32.s32 %v630
    %v632 = vcvt.f32.s32 %v626
    %v633 = vshll.u32 %v632, 16
    %v634 = vadd.s32 %v633, %v631
    %vm635 = vcmp.eq.s32.totalorder %v122, %v200
    %vm636 = vcmp.eq.s32.totalorder %v122, %v214
    %vm637 = vcmp.eq.s32.totalorder %v122, %v228
    %vm638 = vcmp.eq.s32.totalorder %v122, %v242
    %vm639 = vcmp.eq.s32.totalorder %v122, %v256
    %vm640 = vcmp.eq.s32.totalorder %v122, %v270
    %vm641 = vcmp.eq.s32.totalorder %v122, %v284
    %vm642 = vcmp.eq.s32.totalorder %v122, %v298
    %vm643 = vcmp.eq.s32.totalorder %v122, %v312
    %vm644 = vcmp.eq.s32.totalorder %v122, %v326
    %vm645 = vcmp.eq.s32.totalorder %v122, %v340
    %vm646 = vcmp.eq.s32.totalorder %v122, %v354
    %vm647 = vcmp.eq.s32.totalorder %v122, %v368
    %vm648 = vcmp.eq.s32.totalorder %v122, %v382
    %vm649 = vcmp.eq.s32.totalorder %v122, %v396
    %vm650 = vcmp.eq.s32.totalorder %v122, %v410
    %vm651 = vcmp.eq.s32.totalorder %v122, %v424
    %vm652 = vcmp.eq.s32.totalorder %v122, %v438
    %vm653 = vcmp.eq.s32.totalorder %v122, %v452
    %vm654 = vcmp.eq.s32.totalorder %v122, %v466
    %vm655 = vcmp.eq.s32.totalorder %v122, %v480
    %vm656 = vcmp.eq.s32.totalorder %v122, %v494
    %vm657 = vcmp.eq.s32.totalorder %v122, %v508
    %vm658 = vcmp.eq.s32.totalorder %v122, %v522
    %vm659 = vcmp.eq.s32.totalorder %v122, %v536
    %vm660 = vcmp.eq.s32.totalorder %v122, %v550
    %vm661 = vcmp.eq.s32.totalorder %v122, %v564
    %vm662 = vcmp.eq.s32.totalorder %v122, %v578
    %vm663 = vcmp.eq.s32.totalorder %v122, %v592
    %vm664 = vcmp.eq.s32.totalorder %v122, %v606
    %vm665 = vcmp.eq.s32.totalorder %v122, %v620
    %vm666 = vcmp.eq.s32.totalorder %v122, %v634
    %v667 = vsel %vm635, 1.0, 0.0
    %v668 = vsel %vm636, 1.0, 0.0
    %v669 = vsel %vm637, 1.0, 0.0
    %v670 = vsel %vm638, 1.0, 0.0
    %v671 = vsel %vm639, 1.0, 0.0
    %v672 = vsel %vm640, 1.0, 0.0
    %v673 = vsel %vm641, 1.0, 0.0
    %v674 = vsel %vm642, 1.0, 0.0
    %v675 = vsel %vm643, 1.0, 0.0
    %v676 = vsel %vm644, 1.0, 0.0
    %v677 = vsel %vm645, 1.0, 0.0
    %v678 = vsel %vm646, 1.0, 0.0
    %v679 = vsel %vm647, 1.0, 0.0
    %v680 = vsel %vm648, 1.0, 0.0
    %v681 = vsel %vm649, 1.0, 0.0
    %v682 = vsel %vm650, 1.0, 0.0
    %v683 = vsel %vm651, 1.0, 0.0
    %v684 = vsel %vm652, 1.0, 0.0
    %v685 = vsel %vm653, 1.0, 0.0
    %v686 = vsel %vm654, 1.0, 0.0
    %v687 = vsel %vm655, 1.0, 0.0
    %v688 = vsel %vm656, 1.0, 0.0
    %v689 = vsel %vm657, 1.0, 0.0
    %v690 = vsel %vm658, 1.0, 0.0
    %v691 = vsel %vm659, 1.0, 0.0
    %v692 = vsel %vm660, 1.0, 0.0
    %v693 = vsel %vm661, 1.0, 0.0
    %v694 = vsel %vm662, 1.0, 0.0
    %v695 = vsel %vm663, 1.0, 0.0
    %v696 = vsel %vm664, 1.0, 0.0
    %v697 = vsel %vm665, 1.0, 0.0
    %v698 = vsel %vm666, 1.0, 0.0
    %699 = vst [vmem:[#allocation5] sm:$0xff] %v667
    %700 = vst [vmem:[#allocation5 + $0x8] sm:$0xff] %v668
    %701 = vst [vmem:[#allocation5 + $0x10] sm:$0xff] %v669
    %702 = vst [vmem:[#allocation5 + $0x18] sm:$0xff] %v670
    %703 = vst [vmem:[#allocation5 + $0x20] sm:$0xff] %v671
    %704 = vst [vmem:[#allocation5 + $0x28] sm:$0xff] %v672
    %705 = vst [vmem:[#allocation5 + $0x30] sm:$0xff] %v673
    %706 = vst [vmem:[#allocation5 + $0x38] sm:$0xff] %v674
    %707 = vst [vmem:[#allocation5 + $0x40] sm:$0xff] %v675
    %708 = vst [vmem:[#allocation5 + $0x48] sm:$0xff] %v676
    %709 = vst [vmem:[#allocation5 + $0x50] sm:$0xff] %v677
    %710 = vst [vmem:[#allocation5 + $0x58] sm:$0xff] %v678
    %711 = vst [vmem:[#allocation5 + $0x60] sm:$0xff] %v679
    %712 = vst [vmem:[#allocation5 + $0x68] sm:$0xff] %v680
    %713 = vst [vmem:[#allocation5 + $0x70] sm:$0xff] %v681
    %714 = vst [vmem:[#allocation5 + $0x78] sm:$0xff] %v682
    %715 = vst [vmem:[#allocation5 + $0x80] sm:$0xff] %v683
    %716 = vst [vmem:[#allocation5 + $0x88] sm:$0xff] %v684
    %717 = vst [vmem:[#allocation5 + $0x90] sm:$0xff] %v685
    %718 = vst [vmem:[#allocation5 + $0x98] sm:$0xff] %v686
    %719 = vst [vmem:[#allocation5 + $0xa0] sm:$0xff] %v687
    %720 = vst [vmem:[#allocation5 + $0xa8] sm:$0xff] %v688
    %721 = vst [vmem:[#allocation5 + $0xb0] sm:$0xff] %v689
    %722 = vst [vmem:[#allocation5 + $0xb8] sm:$0xff] %v690
    %723 = vst [vmem:[#allocation5 + $0xc0] sm:$0xff] %v691
    %724 = vst [vmem:[#allocation5 + $0xc8] sm:$0xff] %v692
    %725 = vst [vmem:[#allocation5 + $0xd0] sm:$0xff] %v693
    %726 = vst [vmem:[#allocation5 + $0xd8] sm:$0xff] %v694
    %727 = vst [vmem:[#allocation5 + $0xe0] sm:$0xff] %v695
    %728 = vst [vmem:[#allocation5 + $0xe8] sm:$0xff] %v696
    %729 = vst [vmem:[#allocation5 + $0xf0] sm:$0xff] %v697
    %730 = vst [vmem:[#allocation5 + $0xf8] sm:$0xff] %v698
    // Predicated region
    $region10: #{tpu_custom_call.1} parent=1 // pred_check
      _
    $region11: #{tpu_custom_call.1} parent=1 // pred_check_branch
      %732 = sbr.rel (0) target = $region13
    $region12: #{tpu_custom_call.1} parent=1 // pred_region
      %734 = vsyncadd [#allocation4], 0
      %s735 = sshll.u32 [#allocation5], 4
      %s736 = int_to_ptr.vmem [resolvable:$true] %s735
      %s737 = sshll.u32 %s1, 4
      %s738 = int_to_ptr.hbm [resolvable:$true] %s737
      %743 = dma.vmem_to_hbm [thread:$0]  %s736, 4096, %s738, [#allocation4], 128, 128, 8
    $region13: #{tpu_custom_call.1} parent=1 // pred_fallthru
      _
    // Predicated region
    $region14: #{tpu_custom_call.1} parent=1 // pred_check
      _
    $region15: #{tpu_custom_call.1} parent=1 // pred_check_branch
      %745 = sbr.rel (0) target = $region17
    $region16: #{tpu_custom_call.1} parent=1 // pred_region
      %747 = dma.done [#allocation4], 4096
    $region17: #{tpu_custom_call.1} parent=1 // pred_fallthru
      _
    %748 = vsyncpa [#allocation3], 1
    %749 = vsyncpa [#allocation4], 1

</llo_original>
